<compile_context>
chip_gen: v7x
topology: tpu7x:2x2x1
jax: 0.10.0
libtpu: 0.0.40
codegen_flags: <defaults>
</compile_context>

<pallas_src>
import jax
import jax.numpy as jnp
from jax.experimental import pallas as pl
from jax.experimental.pallas import tpu as pltpu


def _round_up(n, m):
    return ((n + m - 1) // m) * m


def munet1_kernel(x_ref, w1_ref, b1_ref, w2_ref, b2_ref, w3_ref, b3_ref, out_ref):
    # x_ref: (3, TM), w1_ref: (64, 3), b1_ref: (64, 1),
    # w2_ref: (64, 64), b2_ref: (64, 1), w3_ref: (64, 1), b3_ref: (1, 1)
    x = x_ref[...]                                   # (3, TM) f32, already lane-dense
    w1 = w1_ref[...]                                 # (64, 3)

    # fc1: K=3 contraction -> three VPU FMAs (cheaper than an MXU push, overlaps with fc2).
    h1 = (b1_ref[...]
          + w1[:, 0:1] * x[0:1, :]
          + w1[:, 1:2] * x[1:2, :]
          + w1[:, 2:3] * x[2:3, :])                  # (64, TM)
    h1 = jnp.maximum(h1, 0.0)

    # fc2: the only real matmul (64x64) -> MXU, f32 accumulate.
    h2 = jnp.dot(w2_ref[...], h1, preferred_element_type=jnp.float32) + b2_ref[...]
    h2 = jnp.maximum(h2, 0.0)                        # (64, TM)

    # fc_mu: N=1 output -> VPU multiply + sublane reduction, produces lane-dense (1, TM).
    mu = jnp.sum(w3_ref[...] * h2, axis=0, keepdims=True) + b3_ref[...]   # (1, TM)
    out_ref[...] = jnp.tanh(mu).astype(out_ref.dtype)


def munet1_forward(x, kernel_params, *, tile_b=256):
    """x: (B, 3) float32. Returns (B, 1) float32."""
    w1t, b1, w2t, b2, w3c, b3 = kernel_params
    B = x.shape[0]

    # Batch tile: multiple of 128 lanes (dense stores), capped at tile_b to keep
    # the (64, TM) f32 activations within vreg budget (TM=256 -> 64 KiB each).
    tm = min(tile_b, _round_up(B, 128))
    b_pad = _round_up(B, tm)
    grid = (b_pad // tm,)

    # Layout plumbing in the wrapper (not in-kernel): put batch on the lane axis.
    x_t = jnp.pad(x.T, ((0, 0), (0, b_pad - B)))     # (3, B_pad)

    resident = lambda i: (0, 0)                      # weights/biases stay in VMEM across tiles
    out_t = pl.pallas_call(
        munet1_kernel,
        out_shape=jax.ShapeDtypeStruct((1, b_pad), jnp.float32),
        grid_spec=pltpu.PrefetchScalarGridSpec(
            num_scalar_prefetch=0,
            grid=grid,
            in_specs=[
                pl.BlockSpec((3, tm), lambda i: (0, i)),    # x tile (lane-dense)
                pl.BlockSpec((64, 3), resident),            # W1^T
                pl.BlockSpec((64, 1), resident),            # b1
                pl.BlockSpec((64, 64), resident),           # W2^T
                pl.BlockSpec((64, 1), resident),            # b2
                pl.BlockSpec((64, 1), resident),            # w3 (column)
                pl.BlockSpec((1, 1), resident),             # b3
            ],
            out_specs=pl.BlockSpec((1, tm), lambda i: (0, i)),
        ),
        compiler_params=pltpu.CompilerParams(
            dimension_semantics=("parallel",),       # shards batch tiles across TCs on v7x
        ),
    )(x_t, w1t, b1, w2t, b2, w3c, b3)

    return out_t[:, :B].T                            # (B, 1); padded rows are discarded


def init_params(key):
    # torch.nn.Linear default init: U(-1/sqrt(fan_in), 1/sqrt(fan_in)); weights as (in, out).
    ks = jax.random.split(key, 6)

    def linear(kw, kb, fan_in, fan_out):
        bound = 1.0 / jnp.sqrt(jnp.float32(fan_in))
        w = jax.random.uniform(kw, (fan_in, fan_out), jnp.float32, -bound, bound)
        b = jax.random.uniform(kb, (fan_out,), jnp.float32, -bound, bound)
        return w, b

    w1, b1 = linear(ks[0], ks[1], 3, 64)
    w2, b2 = linear(ks[2], ks[3], 64, 64)
    w3, b3 = linear(ks[4], ks[5], 64, 1)
    return (w1, b1, w2, b2, w3, b3)


def pack_kernel_params(params):
    # Transposed / column layouts for the batch-on-lanes kernel.
    w1, b1, w2, b2, w3, b3 = params
    return (w1.T,                    # (64, 3)
            b1.reshape(64, 1),       # (64, 1)
            w2.T,                    # (64, 64)
            b2.reshape(64, 1),       # (64, 1)
            w3,                      # (64, 1) column for the VPU reduction
            b3.reshape(1, 1))        # (1, 1)


def reference_forward(x, params):
    w1, b1, w2, b2, w3, b3 = params
    h1 = jnp.maximum(x @ w1 + b1, 0.0)
    h2 = jnp.maximum(h1 @ w2 + b2, 0.0)
    return jnp.tanh(h2 @ w3 + b3)


if __name__ == "__main__":
    key = jax.random.PRNGKey(0)
    k_param, k_x = jax.random.split(key)

    params = init_params(k_param)
    kparams = pack_kernel_params(params)

    # Pendulum observation: (cos(theta), sin(theta), theta_dot) -> 3 features
    x = jax.random.normal(k_x, (8, 3), dtype=jnp.float32)

    mu = munet1_forward(x, kparams)
    mu = jax.block_until_ready(mu)

    ref = reference_forward(x, params)
    assert mu.shape == (8, 1)
    assert jnp.allclose(mu, ref, atol=1e-5, rtol=1e-5)

    print("KERNEL_OK")
</pallas_src>

<mosaic_0001>
module attributes {stable_mosaic.version = 11 : i64} {
  func.func @munet1_kernel(%arg0: i32, %arg1: memref<3x128xf32, #tpu.memory_space<vmem>>, %arg2: memref<64x3xf32, #tpu.memory_space<vmem>>, %arg3: memref<64x1xf32, #tpu.memory_space<vmem>>, %arg4: memref<64x64xf32, #tpu.memory_space<vmem>>, %arg5: memref<64x1xf32, #tpu.memory_space<vmem>>, %arg6: memref<64x1xf32, #tpu.memory_space<vmem>>, %arg7: memref<1x1xf32, #tpu.memory_space<vmem>>, %arg8: memref<1x128xf32, #tpu.memory_space<vmem>>) attributes {dimension_semantics = [#tpu.dimension_semantics<parallel>], iteration_bounds = array<i64: 1>, scalar_prefetch = 0 : i64, scratch_operands = 0 : i64, tpu.core_type = #tpu.core_type<tc>, window_params = [{transform_indices = @transform_0, window_bounds = array<i64: 3, 128>}, {pipeline_mode = #tpu.pipeline_mode<synchronous>, transform_indices = @transform_1, window_bounds = array<i64: 64, 3>}, {pipeline_mode = #tpu.pipeline_mode<synchronous>, transform_indices = @transform_2, window_bounds = array<i64: 64, 1>}, {pipeline_mode = #tpu.pipeline_mode<synchronous>, transform_indices = @transform_3, window_bounds = array<i64: 64, 64>}, {pipeline_mode = #tpu.pipeline_mode<synchronous>, transform_indices = @transform_4, window_bounds = array<i64: 64, 1>}, {pipeline_mode = #tpu.pipeline_mode<synchronous>, transform_indices = @transform_5, window_bounds = array<i64: 64, 1>}, {pipeline_mode = #tpu.pipeline_mode<synchronous>, transform_indices = @transform_6, window_bounds = array<i64: 1, 1>}, {transform_indices = @transform_7, window_bounds = array<i64: 1, 128>}]} {
    %c0 = arith.constant 0 : index
    %c0_0 = arith.constant 0 : index
    %0 = vector.load %arg1[%c0, %c0_0] : memref<3x128xf32, #tpu.memory_space<vmem>>, vector<3x128xf32>
    %c0_1 = arith.constant 0 : index
    %c0_2 = arith.constant 0 : index
    %1 = vector.load %arg2[%c0_1, %c0_2] : memref<64x3xf32, #tpu.memory_space<vmem>>, vector<64x3xf32>
    %c0_3 = arith.constant 0 : index
    %c0_4 = arith.constant 0 : index
    %2 = vector.load %arg3[%c0_3, %c0_4] : memref<64x1xf32, #tpu.memory_space<vmem>>, vector<64x1xf32>
    %3 = vector.extract_strided_slice %1 {offsets = [0, 0], sizes = [64, 1], strides = [1, 1]} : vector<64x3xf32> to vector<64x1xf32>
    %4 = vector.extract_strided_slice %0 {offsets = [0, 0], sizes = [1, 128], strides = [1, 1]} : vector<3x128xf32> to vector<1x128xf32>
    %5 = vector.broadcast %3 : vector<64x1xf32> to vector<64x128xf32>
    %6 = vector.broadcast %4 : vector<1x128xf32> to vector<64x128xf32>
    %7 = arith.mulf %5, %6 : vector<64x128xf32>
    %8 = vector.broadcast %2 : vector<64x1xf32> to vector<64x128xf32>
    %9 = arith.addf %8, %7 : vector<64x128xf32>
    %10 = vector.extract_strided_slice %1 {offsets = [0, 1], sizes = [64, 1], strides = [1, 1]} : vector<64x3xf32> to vector<64x1xf32>
    %11 = vector.extract_strided_slice %0 {offsets = [1, 0], sizes = [1, 128], strides = [1, 1]} : vector<3x128xf32> to vector<1x128xf32>
    %12 = vector.broadcast %10 : vector<64x1xf32> to vector<64x128xf32>
    %13 = vector.broadcast %11 : vector<1x128xf32> to vector<64x128xf32>
    %14 = arith.mulf %12, %13 : vector<64x128xf32>
    %15 = arith.addf %9, %14 : vector<64x128xf32>
    %16 = vector.extract_strided_slice %1 {offsets = [0, 2], sizes = [64, 1], strides = [1, 1]} : vector<64x3xf32> to vector<64x1xf32>
    %17 = vector.extract_strided_slice %0 {offsets = [2, 0], sizes = [1, 128], strides = [1, 1]} : vector<3x128xf32> to vector<1x128xf32>
    %18 = vector.broadcast %16 : vector<64x1xf32> to vector<64x128xf32>
    %19 = vector.broadcast %17 : vector<1x128xf32> to vector<64x128xf32>
    %20 = arith.mulf %18, %19 : vector<64x128xf32>
    %21 = arith.addf %15, %20 : vector<64x128xf32>
    %cst = arith.constant 0.000000e+00 : f32
    %22 = vector.broadcast %cst : f32 to vector<64x128xf32>
    %23 = arith.maximumf %21, %22 : vector<64x128xf32>
    %c0_5 = arith.constant 0 : index
    %c0_6 = arith.constant 0 : index
    %24 = vector.load %arg4[%c0_5, %c0_6] : memref<64x64xf32, #tpu.memory_space<vmem>>, vector<64x64xf32>
    %cst_7 = arith.constant dense<0.000000e+00> : vector<64x128xf32>
    %25 = tpu.matmul %24, %23, %cst_7 {dimension_numbers = #tpu.dot_dimension_numbers<[1], [0], [0], [1], [0, 0, 1, 1], [], []>} : vector<64x64xf32>, vector<64x128xf32>, vector<64x128xf32> -> vector<64x128xf32>
    %c0_8 = arith.constant 0 : index
    %c0_9 = arith.constant 0 : index
    %26 = vector.load %arg5[%c0_8, %c0_9] : memref<64x1xf32, #tpu.memory_space<vmem>>, vector<64x1xf32>
    %27 = vector.broadcast %26 : vector<64x1xf32> to vector<64x128xf32>
    %28 = arith.addf %25, %27 : vector<64x128xf32>
    %cst_10 = arith.constant 0.000000e+00 : f32
    %29 = vector.broadcast %cst_10 : f32 to vector<64x128xf32>
    %30 = arith.maximumf %28, %29 : vector<64x128xf32>
    %c0_11 = arith.constant 0 : index
    %c0_12 = arith.constant 0 : index
    %31 = vector.load %arg6[%c0_11, %c0_12] : memref<64x1xf32, #tpu.memory_space<vmem>>, vector<64x1xf32>
    %32 = vector.broadcast %31 : vector<64x1xf32> to vector<64x128xf32>
    %33 = arith.mulf %32, %30 : vector<64x128xf32>
    %cst_13 = arith.constant dense<0.000000e+00> : vector<128xf32>
    %34 = vector.multi_reduction <add>, %33, %cst_13 [0] : vector<64x128xf32> to vector<128xf32>
    %35 = vector.shape_cast %34 : vector<128xf32> to vector<1x128xf32>
    %c0_14 = arith.constant 0 : index
    %c0_15 = arith.constant 0 : index
    %36 = vector.load %arg7[%c0_14, %c0_15] : memref<1x1xf32, #tpu.memory_space<vmem>>, vector<1x1xf32>
    %37 = vector.broadcast %36 : vector<1x1xf32> to vector<1x128xf32>
    %38 = arith.addf %35, %37 : vector<1x128xf32>
    %39 = math.tanh %38 : vector<1x128xf32>
    %c0_16 = arith.constant 0 : index
    %c0_17 = arith.constant 0 : index
    %40 = vector.load %arg8[%c0_16, %c0_17] : memref<1x128xf32, #tpu.memory_space<vmem>>, vector<1x128xf32>
    tpu.vector_store %arg8[%c0_16, %c0_17], %39 {strides = array<i32>} : memref<1x128xf32, #tpu.memory_space<vmem>>, vector<1x128xf32>,
    return
  }
  func.func @transform_0(%arg0: i32) -> (i32, i32) {
    %c0_i32 = arith.constant 0 : i32
    %c0_i32_0 = arith.constant 0 : i32
    return %c0_i32, %arg0 : i32, i32
  }
  func.func @transform_1(%arg0: i32) -> (i32, i32) {
    %c0_i32 = arith.constant 0 : i32
    %c0_i32_0 = arith.constant 0 : i32
    %c0_i32_1 = arith.constant 0 : i32
    return %c0_i32, %c0_i32_0 : i32, i32
  }
  func.func @transform_2(%arg0: i32) -> (i32, i32) {
    %c0_i32 = arith.constant 0 : i32
    %c0_i32_0 = arith.constant 0 : i32
    %c0_i32_1 = arith.constant 0 : i32
    return %c0_i32, %c0_i32_0 : i32, i32
  }
  func.func @transform_3(%arg0: i32) -> (i32, i32) {
    %c0_i32 = arith.constant 0 : i32
    %c0_i32_0 = arith.constant 0 : i32
    %c0_i32_1 = arith.constant 0 : i32
    return %c0_i32, %c0_i32_0 : i32, i32
  }
  func.func @transform_4(%arg0: i32) -> (i32, i32) {
    %c0_i32 = arith.constant 0 : i32
    %c0_i32_0 = arith.constant 0 : i32
    %c0_i32_1 = arith.constant 0 : i32
    return %c0_i32, %c0_i32_0 : i32, i32
  }
  func.func @transform_5(%arg0: i32) -> (i32, i32) {
    %c0_i32 = arith.constant 0 : i32
    %c0_i32_0 = arith.constant 0 : i32
    %c0_i32_1 = arith.constant 0 : i32
    return %c0_i32, %c0_i32_0 : i32, i32
  }
  func.func @transform_6(%arg0: i32) -> (i32, i32) {
    %c0_i32 = arith.constant 0 : i32
    %c0_i32_0 = arith.constant 0 : i32
    %c0_i32_1 = arith.constant 0 : i32
    return %c0_i32, %c0_i32_0 : i32, i32
  }
  func.func @transform_7(%arg0: i32) -> (i32, i32) {
    %c0_i32 = arith.constant 0 : i32
    %c0_i32_0 = arith.constant 0 : i32
    return %c0_i32, %arg0 : i32, i32
  }
}

</mosaic_0001>

<llo_original>
// kernel: tpu_custom_call.1
$region0: #{tpu_custom_call.1}
  #allocation0 [shape = 'u32[]', space=smem, size = 0x4, offset = 0x4, fixed_abs, tag = 'smem constant byte address 0x4 - core index']
  #allocation1 [shape = 'u32[144,128]{1,0:T(1,128)}', space=vmem, size = 0x12000, scoped, tag = 'internal scratch']
  #allocation2 [shape = 'f32[1,1]{1,0:T(1,128)S(1)}', space=vmem, size = 0x200, scoped, tag = 'scoped memory for tpu_custom_call.1']
  %s0 = inlined_call_operand.vmem [shape: f32[3,128], index: 0, kind: input, shape index: {}]
  %s1 = inlined_call_operand.vmem [shape: f32[64,3], index: 1, kind: input, shape index: {}]
  %s2 = inlined_call_operand.vmem [shape: f32[64,1], index: 2, kind: input, shape index: {}]
  %s3 = inlined_call_operand.vmem [shape: f32[64,64], index: 3, kind: input, shape index: {}]
  %s4 = inlined_call_operand.vmem [shape: f32[64,1], index: 4, kind: input, shape index: {}]
  %s5 = inlined_call_operand.vmem [shape: f32[64,1], index: 5, kind: input, shape index: {}]
  %s6 = inlined_call_operand.<no memory space> [shape: f32[1,1], index: 6, kind: input, shape index: {}]
  %s7 = inlined_call_operand.hbm [shape: f32[1,128], index: 7, kind: output, shape index: {}]
  %s8 = sld [smem:[#allocation0]]
  $region38: #{tpu_custom_call.1} parent=0
    _
  %s10 = ssub.s32 1, %s8
  %s11 = scalar_select 0, %s10, %s8
  %v12 = vstv %s6
  %13 = vst [vmem:[#allocation2] sm:$0x1] %v12
  $region1: #{tpu_custom_call.1} parent=0
    #allocation3 [shape = 'u8[512]{0}', space=vmem, size = 0x400, scoped, tag = 'output window, operand 0, single buffered']
    #allocation4 [shape = 's32[1]{0}', space=sflag, size = 0x4, scoped, tag = 'scoped memory for tpu_custom_call.1']
    %14 = vsyncpa [#allocation4], 0
    // Predicated region
    $region2: #{tpu_custom_call.1} parent=1 // pred_check
      _
    $region3: #{tpu_custom_call.1} parent=1 // pred_check_branch
      %16 = sbr.rel (0) target = $region5
    $region4: #{tpu_custom_call.1} parent=1 // pred_region
      _
    $region5: #{tpu_custom_call.1} parent=1 // pred_fallthru
      _
    // Predicated region
    $region6: #{tpu_custom_call.1} parent=1 // pred_check
      _
    $region7: #{tpu_custom_call.1} parent=1 // pred_check_branch
      %18 = sbr.rel (0) target = $region9
    $region8: #{tpu_custom_call.1} parent=1 // pred_region
      _
    $region9: #{tpu_custom_call.1} parent=1 // pred_fallthru
      _
    // Predicated region
    $region10: #{tpu_custom_call.1} parent=1 // pred_check
      _
    $region11: #{tpu_custom_call.1} parent=1 // pred_check_branch
      %20 = sbr.rel (0) target = $region13
    $region12: #{tpu_custom_call.1} parent=1 // pred_region
      _
    $region13: #{tpu_custom_call.1} parent=1 // pred_fallthru
      _
    // Predicated region
    $region14: #{tpu_custom_call.1} parent=1 // pred_check
      _
    $region15: #{tpu_custom_call.1} parent=1 // pred_check_branch
      %22 = sbr.rel (0) target = $region17
    $region16: #{tpu_custom_call.1} parent=1 // pred_region
      _
    $region17: #{tpu_custom_call.1} parent=1 // pred_fallthru
      _
    // Predicated region
    $region18: #{tpu_custom_call.1} parent=1 // pred_check
      _
    $region19: #{tpu_custom_call.1} parent=1 // pred_check_branch
      %24 = sbr.rel (0) target = $region21
    $region20: #{tpu_custom_call.1} parent=1 // pred_region
      _
    $region21: #{tpu_custom_call.1} parent=1 // pred_fallthru
      _
    // Predicated region
    $region22: #{tpu_custom_call.1} parent=1 // pred_check
      _
    $region23: #{tpu_custom_call.1} parent=1 // pred_check_branch
      %26 = sbr.rel (0) target = $region25
    $region24: #{tpu_custom_call.1} parent=1 // pred_region
      _
    $region25: #{tpu_custom_call.1} parent=1 // pred_fallthru
      _
    // Predicated region
    $region26: #{tpu_custom_call.1} parent=1 // pred_check
      _
    $region27: #{tpu_custom_call.1} parent=1 // pred_check_branch
      %28 = sbr.rel (0) target = $region29
    $region28: #{tpu_custom_call.1} parent=1 // pred_region
      _
    $region29: #{tpu_custom_call.1} parent=1 // pred_fallthru
      _
    %v29 = vld [vmem:[%s0] sm:$0x7]
    %v30 = vld [vmem:[%s1] sm:$0xff]
    %v31 = vld [vmem:[%s1 + $0x8] sm:$0xff]
    %v32 = vld [vmem:[%s1 + $0x10] sm:$0xff]
    %v33 = vld [vmem:[%s1 + $0x18] sm:$0xff]
    %v34 = vld [vmem:[%s1 + $0x20] sm:$0xff]
    %v35 = vld [vmem:[%s1 + $0x28] sm:$0xff]
    %v36 = vld [vmem:[%s1 + $0x30] sm:$0xff]
    %v37 = vld [vmem:[%s1 + $0x38] sm:$0xff]
    %v38 = vld [vmem:[%s2] sm:$0xff]
    %v39 = vld [vmem:[%s2 + $0x8] sm:$0xff]
    %v40 = vld [vmem:[%s2 + $0x10] sm:$0xff]
    %v41 = vld [vmem:[%s2 + $0x18] sm:$0xff]
    %v42 = vld [vmem:[%s2 + $0x20] sm:$0xff]
    %v43 = vld [vmem:[%s2 + $0x28] sm:$0xff]
    %v44 = vld [vmem:[%s2 + $0x30] sm:$0xff]
    %v45 = vld [vmem:[%s2 + $0x38] sm:$0xff]
    %47 = vset.pattern.permute.xlu0 0
    %48 = vperm.xlu0 %47, %v30
    %v49 = vpop.permute.xlu0 %48
    %52 = vset.pattern.permute.xlu0 0
    %53 = vperm.xlu0 %52, %v31
    %v54 = vpop.permute.xlu0 %53
    %57 = vset.pattern.permute.xlu0 0
    %58 = vperm.xlu0 %57, %v32
    %v59 = vpop.permute.xlu0 %58
    %62 = vset.pattern.permute.xlu0 0
    %63 = vperm.xlu0 %62, %v33
    %v64 = vpop.permute.xlu0 %63
    %67 = vset.pattern.permute.xlu0 0
    %68 = vperm.xlu0 %67, %v34
    %v69 = vpop.permute.xlu0 %68
    %72 = vset.pattern.permute.xlu0 0
    %73 = vperm.xlu0 %72, %v35
    %v74 = vpop.permute.xlu0 %73
    %77 = vset.pattern.permute.xlu0 0
    %78 = vperm.xlu0 %77, %v36
    %v79 = vpop.permute.xlu0 %78
    %82 = vset.pattern.permute.xlu0 0
    %83 = vperm.xlu0 %82, %v37
    %v84 = vpop.permute.xlu0 %83
    %v86 = vlaneseq
    %v87 = vshrl.u32 %v86, 7
    %v88 = vsub.s32 0, %v87
    %v89 = vrot.slane %v29, %v88
    %v90 = vmul.f32 %v49, %v89
    %v91 = vmul.f32 %v54, %v89
    %v92 = vmul.f32 %v59, %v89
    %v93 = vmul.f32 %v64, %v89
    %v94 = vmul.f32 %v69, %v89
    %v95 = vmul.f32 %v74, %v89
    %v96 = vmul.f32 %v79, %v89
    %v97 = vmul.f32 %v84, %v89
    %99 = vset.pattern.permute.xlu0 0
    %100 = vperm.xlu0 %99, %v38
    %v101 = vpop.permute.xlu0 %100
    %104 = vset.pattern.permute.xlu0 0
    %105 = vperm.xlu0 %104, %v39
    %v106 = vpop.permute.xlu0 %105
    %109 = vset.pattern.permute.xlu0 0
    %110 = vperm.xlu0 %109, %v40
    %v111 = vpop.permute.xlu0 %110
    %114 = vset.pattern.permute.xlu0 0
    %115 = vperm.xlu0 %114, %v41
    %v116 = vpop.permute.xlu0 %115
    %119 = vset.pattern.permute.xlu0 0
    %120 = vperm.xlu0 %119, %v42
    %v121 = vpop.permute.xlu0 %120
    %124 = vset.pattern.permute.xlu0 0
    %125 = vperm.xlu0 %124, %v43
    %v126 = vpop.permute.xlu0 %125
    %129 = vset.pattern.permute.xlu0 0
    %130 = vperm.xlu0 %129, %v44
    %v131 = vpop.permute.xlu0 %130
    %134 = vset.pattern.permute.xlu0 0
    %135 = vperm.xlu0 %134, %v45
    %v136 = vpop.permute.xlu0 %135
    %v138 = vadd.f32 %v101, %v90
    %v139 = vadd.f32 %v106, %v91
    %v140 = vadd.f32 %v111, %v92
    %v141 = vadd.f32 %v116, %v93
    %v142 = vadd.f32 %v121, %v94
    %v143 = vadd.f32 %v126, %v95
    %v144 = vadd.f32 %v131, %v96
    %v145 = vadd.f32 %v136, %v97
    %146 = vset.pattern.permute.xlu0 1
    %147 = vperm.xlu0 %146, %v30
    %v148 = vpop.permute.xlu0 %147
    %150 = vset.pattern.permute.xlu0 1
    %151 = vperm.xlu0 %150, %v31
    %v152 = vpop.permute.xlu0 %151
    %154 = vset.pattern.permute.xlu0 1
    %155 = vperm.xlu0 %154, %v32
    %v156 = vpop.permute.xlu0 %155
    %158 = vset.pattern.permute.xlu0 1
    %159 = vperm.xlu0 %158, %v33
    %v160 = vpop.permute.xlu0 %159
    %162 = vset.pattern.permute.xlu0 1
    %163 = vperm.xlu0 %162, %v34
    %v164 = vpop.permute.xlu0 %163
    %166 = vset.pattern.permute.xlu0 1
    %167 = vperm.xlu0 %166, %v35
    %v168 = vpop.permute.xlu0 %167
    %170 = vset.pattern.permute.xlu0 1
    %171 = vperm.xlu0 %170, %v36
    %v172 = vpop.permute.xlu0 %171
    %174 = vset.pattern.permute.xlu0 1
    %175 = vperm.xlu0 %174, %v37
    %v176 = vpop.permute.xlu0 %175
    %v178 = vlaneseq
    %v179 = vshrl.u32 %v178, 7
    %v180 = vsub.s32 1, %v179
    %v181 = vrot.slane %v29, %v180
    %v182 = vmul.f32 %v148, %v181
    %v183 = vmul.f32 %v152, %v181
    %v184 = vmul.f32 %v156, %v181
    %v185 = vmul.f32 %v160, %v181
    %v186 = vmul.f32 %v164, %v181
    %v187 = vmul.f32 %v168, %v181
    %v188 = vmul.f32 %v172, %v181
    %v189 = vmul.f32 %v176, %v181
    %v190 = vadd.f32 %v138, %v182
    %v191 = vadd.f32 %v139, %v183
    %v192 = vadd.f32 %v140, %v184
    %v193 = vadd.f32 %v141, %v185
    %v194 = vadd.f32 %v142, %v186
    %v195 = vadd.f32 %v143, %v187
    %v196 = vadd.f32 %v144, %v188
    %v197 = vadd.f32 %v145, %v189
    %198 = vset.pattern.permute.xlu0 2
    %199 = vperm.xlu0 %198, %v30
    %v200 = vpop.permute.xlu0 %199
    %202 = vset.pattern.permute.xlu0 2
    %203 = vperm.xlu0 %202, %v31
    %v204 = vpop.permute.xlu0 %203
    %206 = vset.pattern.permute.xlu0 2
    %207 = vperm.xlu0 %206, %v32
    %v208 = vpop.permute.xlu0 %207
    %210 = vset.pattern.permute.xlu0 2
    %211 = vperm.xlu0 %210, %v33
    %v212 = vpop.permute.xlu0 %211
    %214 = vset.pattern.permute.xlu0 2
    %215 = vperm.xlu0 %214, %v34
    %v216 = vpop.permute.xlu0 %215
    %218 = vset.pattern.permute.xlu0 2
    %219 = vperm.xlu0 %218, %v35
    %v220 = vpop.permute.xlu0 %219
    %222 = vset.pattern.permute.xlu0 2
    %223 = vperm.xlu0 %222, %v36
    %v224 = vpop.permute.xlu0 %223
    %226 = vset.pattern.permute.xlu0 2
    %227 = vperm.xlu0 %226, %v37
    %v228 = vpop.permute.xlu0 %227
    %v230 = vlaneseq
    %v231 = vshrl.u32 %v230, 7
    %v232 = vsub.s32 2, %v231
    %v233 = vrot.slane %v29, %v232
    %v234 = vmul.f32 %v200, %v233
    %v235 = vmul.f32 %v204, %v233
    %v236 = vmul.f32 %v208, %v233
    %v237 = vmul.f32 %v212, %v233
    %v238 = vmul.f32 %v216, %v233
    %v239 = vmul.f32 %v220, %v233
    %v240 = vmul.f32 %v224, %v233
    %v241 = vmul.f32 %v228, %v233
    %v242 = vadd.f32 %v190, %v234
    %v243 = vadd.f32 %v191, %v235
    %v244 = vadd.f32 %v192, %v236
    %v245 = vadd.f32 %v193, %v237
    %v246 = vadd.f32 %v194, %v238
    %v247 = vadd.f32 %v195, %v239
    %v248 = vadd.f32 %v196, %v240
    %v249 = vadd.f32 %v197, %v241
    %v250 = vmax.f32 %v242, 0.0
    %v251 = vmax.f32 %v243, 0.0
    %v252 = vmax.f32 %v244, 0.0
    %v253 = vmax.f32 %v245, 0.0
    %v254 = vmax.f32 %v246, 0.0
    %v255 = vmax.f32 %v247, 0.0
    %v256 = vmax.f32 %v248, 0.0
    %v257 = vmax.f32 %v249, 0.0
    %v258 = vld [vmem:[%s3] sm:$0xff]
    %v259 = vld [vmem:[%s3 + $0x8] sm:$0xff]
    %v260 = vld [vmem:[%s3 + $0x10] sm:$0xff]
    %v261 = vld [vmem:[%s3 + $0x18] sm:$0xff]
    %v262 = vld [vmem:[%s3 + $0x20] sm:$0xff]
    %v263 = vld [vmem:[%s3 + $0x28] sm:$0xff]
    %v264 = vld [vmem:[%s3 + $0x30] sm:$0xff]
    %v265 = vld [vmem:[%s3 + $0x38] sm:$0xff]
    %v266 = vld [vmem:[%s4] sm:$0xff]
    %v267 = vld [vmem:[%s4 + $0x8] sm:$0xff]
    %v268 = vld [vmem:[%s4 + $0x10] sm:$0xff]
    %v269 = vld [vmem:[%s4 + $0x18] sm:$0xff]
    %v270 = vld [vmem:[%s4 + $0x20] sm:$0xff]
    %v271 = vld [vmem:[%s4 + $0x28] sm:$0xff]
    %v272 = vld [vmem:[%s4 + $0x30] sm:$0xff]
    %v273 = vld [vmem:[%s4 + $0x38] sm:$0xff]
    %275 = vset.pattern.permute.xlu0 0
    %276 = vperm.xlu0 %275, %v266
    %v277 = vpop.permute.xlu0 %276
    %280 = vset.pattern.permute.xlu0 0
    %281 = vperm.xlu0 %280, %v267
    %v282 = vpop.permute.xlu0 %281
    %285 = vset.pattern.permute.xlu0 0
    %286 = vperm.xlu0 %285, %v268
    %v287 = vpop.permute.xlu0 %286
    %290 = vset.pattern.permute.xlu0 0
    %291 = vperm.xlu0 %290, %v269
    %v292 = vpop.permute.xlu0 %291
    %295 = vset.pattern.permute.xlu0 0
    %296 = vperm.xlu0 %295, %v270
    %v297 = vpop.permute.xlu0 %296
    %300 = vset.pattern.permute.xlu0 0
    %301 = vperm.xlu0 %300, %v271
    %v302 = vpop.permute.xlu0 %301
    %305 = vset.pattern.permute.xlu0 0
    %306 = vperm.xlu0 %305, %v272
    %v307 = vpop.permute.xlu0 %306
    %310 = vset.pattern.permute.xlu0 0
    %311 = vperm.xlu0 %310, %v273
    %v312 = vpop.permute.xlu0 %311
    %vm314 = vcmask 523264
    %v316 = vsel %vm314, %v258, 0
    %v319 = vsel %vm314, %v259, 0
    %v322 = vsel %vm314, %v260, 0
    %v325 = vsel %vm314, %v261, 0
    %v328 = vsel %vm314, %v262, 0
    %v331 = vsel %vm314, %v263, 0
    %v334 = vsel %vm314, %v264, 0
    %v337 = vsel %vm314, %v265, 0
    %339 = vmatprep.subr.mxu0 0.0
    %340 = vmatpush1.msra.mxu0 %v250
    %341 = vmatprep.subr.mxu0 0.0
    %342 = vmatpush1.msra.mxu0 %v251
    %343 = vmatprep.subr.mxu0 0.0
    %344 = vmatpush1.msra.mxu0 %v252
    %345 = vmatprep.subr.mxu0 0.0
    %346 = vmatpush1.msra.mxu0 %v253
    %347 = vmatprep.subr.mxu0 0.0
    %348 = vmatpush1.msra.mxu0 %v254
    %349 = vmatprep.subr.mxu0 0.0
    %350 = vmatpush1.msra.mxu0 %v255
    %351 = vmatprep.subr.mxu0 0.0
    %352 = vmatpush1.msra.mxu0 %v256
    %353 = vmatprep.subr.mxu0 0.0
    %354 = vmatpush1.msra.mxu0 %v257
    %355 = vmatprep.subr.mxu0 0.0
    %356 = vmatpush1.msra.mxu0 0.0
    %357 = vmatprep.subr.mxu0 0.0
    %358 = vmatpush1.msra.mxu0 0.0
    %359 = vmatprep.subr.mxu0 0.0
    %360 = vmatpush1.msra.mxu0 0.0
    %361 = vmatprep.subr.mxu0 0.0
    %362 = vmatpush1.msra.mxu0 0.0
    %363 = vmatprep.subr.mxu0 0.0
    %364 = vmatpush1.msra.mxu0 0.0
    %365 = vmatprep.subr.mxu0 0.0
    %366 = vmatpush1.msra.mxu0 0.0
    %367 = vmatprep.subr.mxu0 0.0
    %368 = vmatpush1.msra.mxu0 0.0
    %369 = vmatprep.subr.mxu0 0.0
    %370 = vmatpush1.msra.mxu0 0.0
    %371 = vmatprep.subr.mxu0 0.0
    %372 = vmatpush1.msra.mxu0 0.0
    %373 = vmatprep.subr.mxu0 0.0
    %374 = vmatpush1.msra.mxu0 0.0
    %375 = vmatprep.subr.mxu0 0.0
    %376 = vmatpush1.msra.mxu0 0.0
    %377 = vmatprep.subr.mxu0 0.0
    %378 = vmatpush1.msra.mxu0 0.0
    %379 = vmatprep.subr.mxu0 0.0
    %380 = vmatpush1.msra.mxu0 0.0
    %381 = vmatprep.subr.mxu0 0.0
    %382 = vmatpush1.msra.mxu0 0.0
    %383 = vmatprep.subr.mxu0 0.0
    %384 = vmatpush1.msra.mxu0 0.0
    %385 = vmatprep.subr.mxu0 0.0
    %386 = vmatpush1.msra.mxu0 0.0
    %387 = vmatprep.subr.mxu0 0.0
    %388 = vmatpush1.msra.mxu0 0.0
    %389 = vmatprep.subr.mxu0 0.0
    %390 = vmatpush1.msra.mxu0 0.0
    %391 = vmatprep.subr.mxu0 0.0
    %392 = vmatpush1.msra.mxu0 0.0
    %393 = vmatprep.subr.mxu0 0.0
    %394 = vmatpush1.msra.mxu0 0.0
    %395 = vmatprep.subr.mxu0 0.0
    %396 = vmatpush1.msra.mxu0 0.0
    %397 = vmatprep.subr.mxu0 0.0
    %398 = vmatpush1.msra.mxu0 0.0
    %399 = vmatprep.subr.mxu0 0.0
    %400 = vmatpush1.msra.mxu0 0.0
    %401 = vmatprep.subr.mxu0 0.0
    %402 = vmatpush1.msra.mxu0 0.0
    %403 = vmatprep.mubr.f32.mxu0 0.0
    %404 = vmatmul.mubr.f32.gmra.mrb[0].mxu0 %v316
    %v405 = vpop.f32.mrb[0].mxu0
    %v406 = vadd.f32 %v277, %v405
    %v407 = vpop.f32.mrb[0].mxu0
    %408 = vmatprep.mubr.f32.mxu0 0.0
    %409 = vmatmul.mubr.f32.gmra.mrb[0].mxu0 %v319
    %v410 = vpop.f32.mrb[0].mxu0
    %v411 = vadd.f32 %v282, %v410
    %v412 = vpop.f32.mrb[0].mxu0
    %413 = vmatprep.mubr.f32.mxu0 0.0
    %414 = vmatmul.mubr.f32.gmra.mrb[0].mxu0 %v322
    %v415 = vpop.f32.mrb[0].mxu0
    %v416 = vadd.f32 %v287, %v415
    %v417 = vpop.f32.mrb[0].mxu0
    %418 = vmatprep.mubr.f32.mxu0 0.0
    %419 = vmatmul.mubr.f32.gmra.mrb[0].mxu0 %v325
    %v420 = vpop.f32.mrb[0].mxu0
    %v421 = vadd.f32 %v292, %v420
    %v422 = vpop.f32.mrb[0].mxu0
    %423 = vmatprep.mubr.f32.mxu0 0.0
    %424 = vmatmul.mubr.f32.gmra.mrb[0].mxu0 %v328
    %v425 = vpop.f32.mrb[0].mxu0
    %v426 = vadd.f32 %v297, %v425
    %v427 = vpop.f32.mrb[0].mxu0
    %428 = vmatprep.mubr.f32.mxu0 0.0
    %429 = vmatmul.mubr.f32.gmra.mrb[0].mxu0 %v331
    %v430 = vpop.f32.mrb[0].mxu0
    %v431 = vadd.f32 %v302, %v430
    %v432 = vpop.f32.mrb[0].mxu0
    %433 = vmatprep.mubr.f32.mxu0 0.0
    %434 = vmatmul.mubr.f32.gmra.mrb[0].mxu0 %v334
    %v435 = vpop.f32.mrb[0].mxu0
    %v436 = vadd.f32 %v307, %v435
    %v437 = vpop.f32.mrb[0].mxu0
    %438 = vmatprep.mubr.f32.mxu0 0.0
    %439 = vmatmul.mubr.f32.gmra.mrb[0].mxu0 %v337
    %v440 = vpop.f32.mrb[0].mxu0
    %v441 = vadd.f32 %v312, %v440
    %v442 = vpop.f32.mrb[0].mxu0
    %443 = vdwg.mxu0
    %v444 = vmax.f32 %v406, 0.0
    %v445 = vmax.f32 %v411, 0.0
    %v446 = vmax.f32 %v416, 0.0
    %v447 = vmax.f32 %v421, 0.0
    %v448 = vmax.f32 %v426, 0.0
    %v449 = vmax.f32 %v431, 0.0
    %v450 = vmax.f32 %v436, 0.0
    %v451 = vmax.f32 %v441, 0.0
    %v452 = vld [vmem:[%s5] sm:$0xff]
    %v453 = vld [vmem:[%s5 + $0x8] sm:$0xff]
    %v454 = vld [vmem:[%s5 + $0x10] sm:$0xff]
    %v455 = vld [vmem:[%s5 + $0x18] sm:$0xff]
    %v456 = vld [vmem:[%s5 + $0x20] sm:$0xff]
    %v457 = vld [vmem:[%s5 + $0x28] sm:$0xff]
    %v458 = vld [vmem:[%s5 + $0x30] sm:$0xff]
    %v459 = vld [vmem:[%s5 + $0x38] sm:$0xff]
    %461 = vset.pattern.permute.xlu0 0
    %462 = vperm.xlu0 %461, %v452
    %v463 = vpop.permute.xlu0 %462
    %466 = vset.pattern.permute.xlu0 0
    %467 = vperm.xlu0 %466, %v453
    %v468 = vpop.permute.xlu0 %467
    %471 = vset.pattern.permute.xlu0 0
    %472 = vperm.xlu0 %471, %v454
    %v473 = vpop.permute.xlu0 %472
    %476 = vset.pattern.permute.xlu0 0
    %477 = vperm.xlu0 %476, %v455
    %v478 = vpop.permute.xlu0 %477
    %481 = vset.pattern.permute.xlu0 0
    %482 = vperm.xlu0 %481, %v456
    %v483 = vpop.permute.xlu0 %482
    %486 = vset.pattern.permute.xlu0 0
    %487 = vperm.xlu0 %486, %v457
    %v488 = vpop.permute.xlu0 %487
    %491 = vset.pattern.permute.xlu0 0
    %492 = vperm.xlu0 %491, %v458
    %v493 = vpop.permute.xlu0 %492
    %496 = vset.pattern.permute.xlu0 0
    %497 = vperm.xlu0 %496, %v459
    %v498 = vpop.permute.xlu0 %497
    %v500 = vmul.f32 %v463, %v444
    %v501 = vmul.f32 %v468, %v445
    %v502 = vmul.f32 %v473, %v446
    %v503 = vmul.f32 %v478, %v447
    %v504 = vmul.f32 %v483, %v448
    %v505 = vmul.f32 %v488, %v449
    %v506 = vmul.f32 %v493, %v450
    %v507 = vmul.f32 %v498, %v451
    %v508 = vadd.f32 %v500, %v501
    %v509 = vadd.f32 %v508, %v502
    %v510 = vadd.f32 %v509, %v503
    %v511 = vadd.f32 %v510, %v504
    %v512 = vadd.f32 %v511, %v505
    %v513 = vadd.f32 %v512, %v506
    %v514 = vadd.f32 %v513, %v507
    %v515 = vrot.slane %v514, 4
    %v516 = vadd.f32 %v514, %v515
    %v517 = vrot.slane %v516, 2
    %v518 = vadd.f32 %v516, %v517
    %v519 = vrot.slane %v518, 1
    %v520 = vadd.f32 %v518, %v519
    %v521 = vld [vmem:[#allocation2] sm:$0x1]
    %523 = vset.pattern.permute.xlu0 0
    %524 = vperm.xlu0 %523, %v521
    %v525 = vpop.permute.xlu0 %524
    %v527 = vlaneseq
    %v528 = vshrl.u32 %v527, 7
    %v529 = vsub.s32 0, %v528
    %v530 = vrot.slane %v525, %v529
    %v531 = vadd.f32 %v520, %v530
    %v532 = vtanh.pop %v531
    %533 = vst [vmem:[#allocation3] sm:$0x1] %v532
    // Predicated region
    $region30: #{tpu_custom_call.1} parent=1 // pred_check
      _
    $region31: #{tpu_custom_call.1} parent=1 // pred_check_branch
      %535 = sbr.rel (0) target = $region33
    $region32: #{tpu_custom_call.1} parent=1 // pred_region
      %s537 = ssub.s32 16, 16
      %538 = vsyncadd [#allocation4], %s537
      %s540 = sshll.u32 [#allocation3], 4
      %s541 = int_to_ptr.vmem [resolvable:$true] %s540
      %543 = dma.vmem_to_hbm [thread:$0]  %s541, 16, %s7, [#allocation4]
    $region33: #{tpu_custom_call.1} parent=1 // pred_fallthru
      _
    // Predicated region
    $region34: #{tpu_custom_call.1} parent=1 // pred_check
      _
    $region35: #{tpu_custom_call.1} parent=1 // pred_check_branch
      %545 = sbr.rel (0) target = $region37
    $region36: #{tpu_custom_call.1} parent=1 // pred_region
      %546 = dma.done [#allocation4], 16
    $region37: #{tpu_custom_call.1} parent=1 // pred_fallthru
      _
    %547 = vsyncpa [#allocation4], 1

</llo_original>
